<compile_context>
chip_gen: v7x
topology: tpu7x:2x2x1
jax: 0.10.0
libtpu: 0.0.40
codegen_flags: <defaults>
</compile_context>

<pallas_src>
import functools

import jax
import jax.numpy as jnp
from jax import lax
from jax.experimental import pallas as pl
from jax.experimental.pallas import tpu as pltpu

EPS = 1e-07
_MIN_SPLIT_B = 2048   # below this, don't force a >=2-tile grid (v7x megacore)


def _round_up(n, m):
    return ((n + m - 1) // m) * m


def _logitnorm_ce_kernel(*refs, true_b, has_t):
    # x_ref : (TILE_B, C) logits, native layout (batch on sublanes, classes on lanes)
    # y_ref : (TILE_B, 1) int32 labels
    # t_ref : (TILE_B, 1) f32 per-sample temperature      (only when has_t)
    # out_ref: (1, 8, 128) f32 per-tile partial CE sum (broadcast-filled block)
    if has_t:
        x_ref, y_ref, t_ref, out_ref = refs
    else:
        x_ref, y_ref, out_ref = refs
    tile_b, _ = x_ref.shape

    x = x_ref[...].astype(jnp.float32)                                 # (TB, C)
    y = y_ref[...]                                                     # (TB, 1)

    # norms = ||x||_2 over classes (lane reduce); eps added OUTSIDE the sqrt to
    # match torch.norm(...) + 1e-7.  1/norms goes to the EUP reciprocal path.
    norms = jnp.sqrt(jnp.sum(x * x, axis=1, keepdims=True)) + EPS      # (TB, 1)
    inv_norms = pl.reciprocal(norms, approx=True)
    scale = (t_ref[...] * inv_norms) if has_t else inv_norms           # (TB, 1)
    z = x * scale                                                      # (TB, C)

    # Gather z[i, y_i] via class-index iota compare (one-hot select, VPU/XLU).
    cls = lax.broadcasted_iota(jnp.int32, z.shape, 1)                  # (TB, C)
    picked = jnp.sum(jnp.where(cls == y, z, 0.0), axis=1,
                     keepdims=True)                                    # (TB, 1)

    # Fused cross-entropy: log(sum_c exp(z_c - z_y)) == lse(z) - z_y.  The max
    # stabilizer is dropped (one fewer lane reduce); safe because |z_c| <= |T|.
    ce = jnp.log(jnp.sum(jnp.exp(z - picked), axis=1, keepdims=True))  # (TB, 1)

    # Mask rows past the true batch size (only the last tile can be partial);
    # emitted only when the tile size does not divide B exactly.
    if true_b % tile_b != 0:
        row = pl.program_id(0) * tile_b + lax.broadcasted_iota(jnp.int32, ce.shape, 0)
        ce = jnp.where(row < true_b, ce, 0.0)

    # Per-tile partial sum, written as a fully dense (8,128) block.
    out_ref[...] = jnp.zeros_like(out_ref) + jnp.sum(ce)


@functools.partial(jax.jit, static_argnames=("max_tile_b",))
def _logitnorm1_impl(x, y, T, *, max_tile_b):
    b, c = x.shape

    # Batch tiling along sublanes.  No padding: cdiv grid + in-kernel masking of
    # the partial last tile.  Per-sample VMEM is ~3 KiB double-buffered (x/y/T
    # blocks are lane-padded to 128), so keep max_tile_b <= ~8192 for the 32 MiB
    # scoped-VMEM limit set below.
    sub = max(8, 32 // x.dtype.itemsize)          # 8 for f32, 16 for bf16 packing
    tile_b = _round_up(min(max_tile_b, _round_up(b, sub)), sub)
    if b >= _MIN_SPLIT_B and pl.cdiv(b, tile_b) < 2:
        # v7x megacore: make sure the "parallel" grid axis has >= 2 steps.
        tile_b = _round_up(pl.cdiv(b, 2), sub)
    num_tiles = pl.cdiv(b, tile_b)

    y2d = y.astype(jnp.int32).reshape(b, 1)
    args = [x, y2d]
    in_specs = [
        pl.BlockSpec((tile_b, c), lambda i: (i, 0)),   # x: read once, native layout
        pl.BlockSpec((tile_b, 1), lambda i: (i, 0)),   # y
    ]
    has_t = T is not None
    if has_t:
        args.append(T.astype(jnp.float32).reshape(b, 1))
        in_specs.append(pl.BlockSpec((tile_b, 1), lambda i: (i, 0)))

    kernel = functools.partial(_logitnorm_ce_kernel, true_b=b, has_t=has_t)
    partials = pl.pallas_call(
        kernel,
        out_shape=jax.ShapeDtypeStruct((num_tiles, 8, 128), jnp.float32),
        grid=(num_tiles,),
        in_specs=in_specs,
        out_specs=pl.BlockSpec((1, 8, 128), lambda i: (i, 0, 0)),
        compiler_params=pltpu.CompilerParams(
            dimension_semantics=("parallel",),
            vmem_limit_bytes=32 * 1024 * 1024),        # v5e scoped default is 16 MiB
    )(*args)

    # Tiny finish: one partial sum per tile -> mean over the true batch.
    return jnp.sum(partials[:, 0, 0]) * (1.0 / b)


def logit_norm1_loss(x, y, T=None, *, max_tile_b=4096):
    """JAX/Pallas equivalent of LogitNorm1.forward.

    Args:
      x: (B, C) logits (f32 or bf16; upcast happens inside the kernel).
      y: (B,) integer class labels.
      T: optional (B,) per-sample temperature.  None means T = 1 (the kernel then
         skips the T input entirely, saving its HBM read).
    Returns:
      Scalar mean cross-entropy of the L2-normalized (and T-scaled) logits.
    """
    y = jnp.asarray(y)
    T = None if T is None else jnp.asarray(T)
    return _logitnorm1_impl(x, y, T, max_tile_b=max_tile_b)


if __name__ == "__main__":
    key = jax.random.PRNGKey(0)
    kx, ky, k2 = jax.random.split(key, 3)

    def ref_loss(x, y, T=None):
        b = x.shape[0]
        if T is None:
            T = jnp.ones((b,), jnp.float32)
        norms = jnp.linalg.norm(x, axis=1, keepdims=True) + EPS
        z = x / norms * T[:, None]
        lse = jax.scipy.special.logsumexp(z, axis=1)
        return jnp.mean(lse - z[jnp.arange(b), y])

    # Small case (single tile), default T = None.
    B, C = 8, 10
    x = jax.random.normal(kx, (B, C), dtype=jnp.float32)
    y = jax.random.randint(ky, (B,), 0, C, dtype=jnp.int32)
    loss = logit_norm1_loss(x, y)
    jax.block_until_ready(loss)
    # atol covers the ~2^-14 relative error of the approx EUP reciprocal.
    assert jnp.allclose(loss, ref_loss(x, y), atol=5e-4), (loss, ref_loss(x, y))

    # Explicit (non-default) per-sample T.
    T = jnp.linspace(0.5, 2.0, B, dtype=jnp.float32)
    loss_t = logit_norm1_loss(x, y, T)
    jax.block_until_ready(loss_t)
    assert jnp.allclose(loss_t, ref_loss(x, y, T), atol=5e-4), (loss_t, ref_loss(x, y, T))

    # Multi-tile grid with a partial (masked) last tile: B=300, tile_b=128.
    B2 = 300
    x2 = jax.random.normal(k2, (B2, C), dtype=jnp.float32)
    y2 = jax.random.randint(jax.random.PRNGKey(1), (B2,), 0, C, dtype=jnp.int32)
    loss2 = logit_norm1_loss(x2, y2, max_tile_b=128)
    jax.block_until_ready(loss2)
    assert jnp.allclose(loss2, ref_loss(x2, y2), atol=5e-4), (loss2, ref_loss(x2, y2))

    print("KERNEL_OK")
</pallas_src>

<mosaic_0001>
module attributes {stable_mosaic.version = 11 : i64} {
  func.func @_logitnorm_ce_kernel(%arg0: i32, %arg1: memref<8x10xf32, #tpu.memory_space<vmem>>, %arg2: memref<8x1xi32, #tpu.memory_space<vmem>>, %arg3: memref<1x8x128xf32, #tpu.memory_space<vmem>>) attributes {dimension_semantics = [#tpu.dimension_semantics<parallel>], iteration_bounds = array<i64: 1>, scalar_prefetch = 0 : i64, scratch_operands = 0 : i64, tpu.core_type = #tpu.core_type<tc>, window_params = [{transform_indices = @transform_0, window_bounds = array<i64: 8, 10>}, {transform_indices = @transform_1, window_bounds = array<i64: 8, 1>}, {transform_indices = @transform_2, window_bounds = array<i64: 1, 8, 128>}]} {
    %c0 = arith.constant 0 : index
    %c0_0 = arith.constant 0 : index
    %0 = vector.load %arg1[%c0, %c0_0] : memref<8x10xf32, #tpu.memory_space<vmem>>, vector<8x10xf32>
    %c0_1 = arith.constant 0 : index
    %c0_2 = arith.constant 0 : index
    %1 = vector.load %arg2[%c0_1, %c0_2] : memref<8x1xi32, #tpu.memory_space<vmem>>, vector<8x1xi32>
    %2 = arith.mulf %0, %0 : vector<8x10xf32>
    %cst = arith.constant dense<0.000000e+00> : vector<8xf32>
    %3 = vector.multi_reduction <add>, %2, %cst [1] : vector<8x10xf32> to vector<8xf32>
    %4 = vector.shape_cast %3 : vector<8xf32> to vector<8x1xf32>
    %5 = math.sqrt %4 : vector<8x1xf32>
    %cst_3 = arith.constant 1.000000e-07 : f32
    %6 = vector.broadcast %cst_3 : f32 to vector<8x1xf32>
    %7 = arith.addf %5, %6 : vector<8x1xf32>
    %8 = tpu.reciprocal %7 {approx = true} : vector<8x1xf32> -> vector<8x1xf32>
    %9 = vector.broadcast %8 : vector<8x1xf32> to vector<8x10xf32>
    %10 = arith.mulf %0, %9 : vector<8x10xf32>
    %11 = tpu.iota {dimensions = array<i32: 1>} : vector<8x10xi32>
    %12 = vector.broadcast %1 : vector<8x1xi32> to vector<8x10xi32>
    %13 = arith.cmpi eq, %11, %12 : vector<8x10xi32>
    %cst_4 = arith.constant 0.000000e+00 : f32
    %14 = vector.broadcast %cst_4 : f32 to vector<8x10xf32>
    %15 = arith.select %13, %10, %14 : vector<8x10xi1>, vector<8x10xf32>
    %cst_5 = arith.constant dense<0.000000e+00> : vector<8xf32>
    %16 = vector.multi_reduction <add>, %15, %cst_5 [1] : vector<8x10xf32> to vector<8xf32>
    %17 = vector.shape_cast %16 : vector<8xf32> to vector<8x1xf32>
    %18 = vector.broadcast %17 : vector<8x1xf32> to vector<8x10xf32>
    %19 = arith.subf %10, %18 : vector<8x10xf32>
    %20 = math.exp %19 : vector<8x10xf32>
    %cst_6 = arith.constant dense<0.000000e+00> : vector<8xf32>
    %21 = vector.multi_reduction <add>, %20, %cst_6 [1] : vector<8x10xf32> to vector<8xf32>
    %22 = vector.shape_cast %21 : vector<8xf32> to vector<8x1xf32>
    %23 = math.log %22 : vector<8x1xf32>
    %cst_7 = arith.constant 0.000000e+00 : f32
    %24 = vector.broadcast %cst_7 : f32 to vector<1x8x128xf32>
    %25 = vector.shape_cast %23 : vector<8x1xf32> to vector<1x8x1xf32>
    %cst_8 = arith.constant dense<0.000000e+00> : vector<1xf32>
    %26 = vector.multi_reduction <add>, %25, %cst_8 [1, 2] : vector<1x8x1xf32> to vector<1xf32>
    %27 = vector.shape_cast %26 : vector<1xf32> to vector<1x1x1xf32>
    %28 = vector.extract %27[0, 0, 0] : f32 from vector<1x1x1xf32>
    %29 = vector.broadcast %28 : f32 to vector<1x8x128xf32>
    %30 = arith.addf %24, %29 : vector<1x8x128xf32>
    %c0_9 = arith.constant 0 : index
    %c0_10 = arith.constant 0 : index
    %c0_11 = arith.constant 0 : index
    %31 = vector.load %arg3[%c0_9, %c0_10, %c0_11] : memref<1x8x128xf32, #tpu.memory_space<vmem>>, vector<1x8x128xf32>
    tpu.vector_store %arg3[%c0_9, %c0_10, %c0_11], %30 {strides = array<i32>} : memref<1x8x128xf32, #tpu.memory_space<vmem>>, vector<1x8x128xf32>,
    return
  }
  func.func @transform_0(%arg0: i32) -> (i32, i32) {
    %c0_i32 = arith.constant 0 : i32
    %c0_i32_0 = arith.constant 0 : i32
    return %arg0, %c0_i32 : i32, i32
  }
  func.func @transform_1(%arg0: i32) -> (i32, i32) {
    %c0_i32 = arith.constant 0 : i32
    %c0_i32_0 = arith.constant 0 : i32
    return %arg0, %c0_i32 : i32, i32
  }
  func.func @transform_2(%arg0: i32) -> (i32, i32, i32) {
    %c0_i32 = arith.constant 0 : i32
    %c0_i32_0 = arith.constant 0 : i32
    %c0_i32_1 = arith.constant 0 : i32
    return %arg0, %c0_i32, %c0_i32_0 : i32, i32, i32
  }
}

</mosaic_0001>

<llo_original>
// kernel: _logitnorm1_impl.1
$region0: #{_logitnorm1_impl.1}
  #allocation0 [shape = 'u32[]', space=smem, size = 0x4, offset = 0x4, fixed_abs, tag = 'smem constant byte address 0x4 - core index']
  #allocation1 [shape = 'u32[144,128]{1,0:T(1,128)}', space=vmem, size = 0x12000, scoped, tag = 'internal scratch']
  %s0 = inlined_call_operand.vmem [shape: f32[8,10], index: 0, kind: input, shape index: {}]
  %s1 = inlined_call_operand.vmem [shape: s32[8,1], index: 1, kind: input, shape index: {}]
  %s2 = inlined_call_operand.vmem [shape: f32[1,8,128], index: 2, kind: output, shape index: {}]
  %s3 = sld [smem:[#allocation0]]
  $region18: #{_logitnorm1_impl.1} parent=0
    _
  %s5 = ssub.s32 1, %s3
  %s6 = scalar_select 0, %s5, %s3
  // Predicated region
  $region2: #{_logitnorm1_impl.1} parent=0 // pred_check
    _
  $region3: #{_logitnorm1_impl.1} parent=0 // pred_check_branch
    %8 = sbr.rel (0) target = $region5
  $region4: #{_logitnorm1_impl.1} parent=0 // pred_region
    _
  $region5: #{_logitnorm1_impl.1} parent=0 // pred_fallthru
    _
  // Predicated region
  $region6: #{_logitnorm1_impl.1} parent=0 // pred_check
    _
  $region7: #{_logitnorm1_impl.1} parent=0 // pred_check_branch
    %10 = sbr.rel (0) target = $region9
  $region8: #{_logitnorm1_impl.1} parent=0 // pred_region
    _
  $region9: #{_logitnorm1_impl.1} parent=0 // pred_fallthru
    _
  %v11 = vld [vmem:[%s0] sm:$0xff]
  %v12 = vld [vmem:[%s1] sm:$0xff]
  %v13 = vmul.f32 %v11, %v11
  %vm14 = vcmask 80896
  %v15 = vsel %vm14, %v13, 0.0
  %16 = vadd.xlane.f32.xlu0 %v15
  %v17 = vpop.xlane.xlu0 %16
  %v18 = vrsqrt.pop %v17
  %v19 = vmul.f32 %v17, %v18
  %vm20 = vcmp.eq.f32.partialorder %v17, inf
  %v21 = vsel %vm20, %v17, %v19
  %vm22 = vcmp.eq.f32.partialorder %v17, 0.0
  %v23 = vand.u32 %v17, 2147483648
  %v24 = vsel %vm22, %v23, %v21
  %v25 = vadd.f32 %v24, 1e-07
  %v26 = vrcp.pop %v25
  %v27 = vmul.f32 %v11, %v26
  %v28 = vlaneseq
  %v29 = vand.u32 %v28, 127
  %30 = vset.pattern.permute.xlu0 0
  %31 = vperm.xlu0 %30, %v12
  %v32 = vpop.permute.xlu0 %31
  %vm33 = vcmp.eq.s32.totalorder %v29, %v32
  %v34 = vsel %vm33, %v27, 0.0
  %v35 = vsel %vm14, %v34, 0.0
  %36 = vadd.xlane.f32.xlu0 %v35
  %v37 = vpop.xlane.xlu0 %36
  %v38 = vsub.f32 %v27, %v37
  %v39 = vmul.f32 %v38, 1.442695
  %v40 = vpow.pop %v39
  %v41 = vsel %vm14, %v40, 0.0
  %42 = vadd.xlane.f32.xlu0 %v41
  %v43 = vpop.xlane.xlu0 %42
  %v44 = vlog2.pop %v43
  %v45 = vmul.f32 %v44, 0.6931472
  %vm46 = vcmask 7168
  %v47 = vsel %vm46, %v45, 0.0
  %48 = vadd.xlane.f32.xlu0 %v47
  %v49 = vpop.xlane.xlu0 %48
  %v50 = vrot.slane %v49, 4
  %v51 = vadd.f32 %v49, %v50
  %v52 = vrot.slane %v51, 2
  %v53 = vadd.f32 %v51, %v52
  %v54 = vrot.slane %v53, 1
  %v55 = vadd.f32 %v53, %v54
  %s56 = vtos %v55
  %v57 = vstv %s56
  %v58 = vadd.f32 %v57, 0.0
  %59 = vst [vmem:[%s2] sm:$0xff] %v58
  // Predicated region
  $region10: #{_logitnorm1_impl.1} parent=0 // pred_check
    _
  $region11: #{_logitnorm1_impl.1} parent=0 // pred_check_branch
    %61 = sbr.rel (0) target = $region13
  $region12: #{_logitnorm1_impl.1} parent=0 // pred_region
    _
  $region13: #{_logitnorm1_impl.1} parent=0 // pred_fallthru
    _
  // Predicated region
  $region14: #{_logitnorm1_impl.1} parent=0 // pred_check
    _
  $region15: #{_logitnorm1_impl.1} parent=0 // pred_check_branch
    %63 = sbr.rel (0) target = $region17
  $region16: #{_logitnorm1_impl.1} parent=0 // pred_region
    _
  $region17: #{_logitnorm1_impl.1} parent=0 // pred_fallthru
    _

</llo_original>
